<compile_context>
chip_gen: v5e
topology: v5e:2x2
jax: 0.10.0
libtpu: 0.0.40
codegen_flags: <defaults>
</compile_context>

<pallas_src>
import functools

import jax
import jax.numpy as jnp
from jax.experimental import pallas as pl
from jax.experimental.pallas import tpu as pltpu


def _nll_kernel(x_ref, t_ref, out_ref, acc_ref, *, sign, n_total, tile_n,
                blocks_per_part, need_row_mask):
    p = pl.program_id(0)          # TensorCore partition (parallel axis)
    i = pl.program_id(1)          # reduction step within the partition

    @pl.when(i == 0)
    def _init():
        acc_ref[...] = jnp.zeros_like(acc_ref)

    x = x_ref[...]                # (tile_n, C), native dtype (no blanket f32 upcast)
    t = t_ref[...]                # (tile_n, 1) int32

    if need_row_mask:
        # Invalidate targets of rows past N (padded tail block and duplicated
        # clamped blocks of the last partition): the class compare then fails
        # and those rows contribute exactly 0.  Only (tile_n, 1) VALU work.
        row0 = (p * blocks_per_part + i) * tile_n
        rows = jax.lax.broadcasted_iota(jnp.int32, (tile_n, 1), 0) + row0
        t = jnp.where(rows < n_total, t, jnp.int32(-1))

    # (1, C) class iota broadcast against (tile_n, 1) targets -> (tile_n, C).
    classes = jax.lax.broadcasted_iota(jnp.int32, (1, x.shape[1]), 1)
    mask = classes == t
    # Select (not multiply): safe against -inf / NaN in x and in block padding.
    picked = jnp.where(mask, x, jnp.zeros_like(x))
    # Lane (XLU) reduce per row in native dtype — exact, since each row has at
    # most one nonzero — then upcast only the (tile_n, 1) partial to f32.
    acc_ref[...] += jnp.sum(picked, axis=1, keepdims=True).astype(jnp.float32)

    @pl.when(i == pl.num_programs(1) - 1)
    def _finalize():
        # sign * (-sum / N) folded into one scale, applied once per partition.
        scale = jnp.float32(-sign / n_total)
        out_ref[...] = jnp.sum(acc_ref[...], axis=0, keepdims=True) * scale


def _choose_tile_n(n, c, itemsize, per_buffer_bytes=4 * 1024 * 1024):
    """Rows per tile sized by bytes (~4 MiB per x buffer), multiple of 8."""
    rows = per_buffer_bytes // max(1, c * itemsize)
    rows = max(8, (rows // 8) * 8)
    if rows >= n:
        return n                  # single full-extent block (no (8,128) constraint)
    return rows


def neg_ll_loss(x, target, min_problem=True, tile_n=None):
    """Pallas implementation of NegLLLoss.forward (reduction='mean', no weights).

    x: (N, C) float log-probabilities; target: (N,) int class indices.
    Returns a scalar float32.
    Note: out-of-range / negative target ids silently contribute 0 (PyTorch
    NLLLoss would raise); `weight` / `ignore_index` / non-mean reductions are
    not used by this module and are not implemented.
    """
    n, c = x.shape
    sign = 1.0 if min_problem else -1.0
    t2d = target.astype(jnp.int32).reshape(n, 1)

    if tile_n is None:
        tile_n = _choose_tile_n(n, c, x.dtype.itemsize)

    num_blocks = pl.cdiv(n, tile_n)
    # Leading "parallel" axis of size 2 shards the batch across the two
    # TensorCores on v7x; on 1-TC chips both partitions just run serially.
    num_parts = 2 if num_blocks >= 2 else 1
    blocks_per_part = pl.cdiv(num_blocks, num_parts)
    # Padding exists (tail rows or duplicated clamped blocks) -> row masking.
    need_row_mask = (num_parts * blocks_per_part * tile_n) != n

    def _block_map(p, i):
        blk = p * blocks_per_part + i
        # Clamp duplicated blocks of the last partition to a valid block; their
        # rows are fully masked in the kernel, so the data is never used.
        blk = jnp.minimum(blk, num_blocks - 1)
        return (blk, 0)

    # Deeper pipelining only helps in the small-tile regime; cheap to request.
    x_spec_kwargs = {}
    x_tile_bytes = tile_n * c * x.dtype.itemsize
    if blocks_per_part >= 4 and x_tile_bytes < (512 * 1024):
        x_spec_kwargs["pipeline_mode"] = pl.Buffered(3)

    kernel = functools.partial(
        _nll_kernel, sign=sign, n_total=n, tile_n=tile_n,
        blocks_per_part=blocks_per_part, need_row_mask=need_row_mask,
    )

    out = pl.pallas_call(
        kernel,
        out_shape=jax.ShapeDtypeStruct((num_parts, 1), jnp.float32),
        grid_spec=pltpu.PrefetchScalarGridSpec(
            num_scalar_prefetch=0,
            grid=(num_parts, blocks_per_part),
            in_specs=[
                pl.BlockSpec((tile_n, c), _block_map, **x_spec_kwargs),  # x tile
                pl.BlockSpec((tile_n, 1), _block_map),                   # target tile
            ],
            out_specs=pl.BlockSpec((1, 1), lambda p, i: (p, 0)),  # per-partition partial
            scratch_shapes=[pltpu.VMEM((tile_n, 1), jnp.float32)],  # per-row f32 partials
        ),
        compiler_params=pltpu.CompilerParams(
            dimension_semantics=("parallel", "arbitrary"),
            vmem_limit_bytes=32 * 1024 * 1024,  # safe on v5e/v6e/v7x, fits 2x4 MiB tiles
        ),
        cost_estimate=pl.CostEstimate(
            flops=2 * n * c,
            transcendentals=0,
            bytes_accessed=n * c * x.dtype.itemsize + n * 4 + num_parts * 4,
        ),
    )(x, t2d)
    # Per-partition partials are already scaled by -sign/N; just sum them.
    return jnp.sum(out)


if __name__ == "__main__":
    key = jax.random.PRNGKey(0)
    k1, k2, k3, k4 = jax.random.split(key, 4)

    # --- small shape matching the module's 2-D NLLLoss input ---
    N, C = 8, 32
    logits = jax.random.normal(k1, (N, C), dtype=jnp.float32)
    x = jax.nn.log_softmax(logits, axis=-1)
    target = jax.random.randint(k2, (N,), 0, C, dtype=jnp.int32)

    loss_min = neg_ll_loss(x, target, min_problem=True)    # plain NLL
    loss_max = neg_ll_loss(x, target, min_problem=False)   # negated NLL
    jax.block_until_ready((loss_min, loss_max))

    ref = -jnp.mean(x[jnp.arange(N), target])
    assert jnp.allclose(loss_min, ref, atol=1e-5), (loss_min, ref)
    assert jnp.allclose(loss_max, -ref, atol=1e-5), (loss_max, -ref)

    # --- exercise the multi-tile / dual-partition path with masked tail ---
    N2, C2 = 20, 256
    logits2 = jax.random.normal(k3, (N2, C2), dtype=jnp.float32)
    x2 = jax.nn.log_softmax(logits2, axis=-1)
    target2 = jax.random.randint(k4, (N2,), 0, C2, dtype=jnp.int32)
    ref2 = -jnp.mean(x2[jnp.arange(N2), target2])

    # explicit small tile: grid (2, 2), clamped duplicate block + masked tail
    loss2 = neg_ll_loss(x2, target2, min_problem=True, tile_n=8)
    # default byte-sized tile: single full-extent block
    loss2_default = neg_ll_loss(x2, target2, min_problem=True)
    jax.block_until_ready((loss2, loss2_default))
    assert jnp.allclose(loss2, ref2, atol=1e-5), (loss2, ref2)
    assert jnp.allclose(loss2_default, ref2, atol=1e-5), (loss2_default, ref2)

    print("KERNEL_OK")
</pallas_src>

<mosaic_0001>
module attributes {stable_mosaic.version = 11 : i64} {
  func.func @_nll_kernel(%arg0: i32, %arg1: i32, %arg2: memref<8x32xf32, #tpu.memory_space<vmem>>, %arg3: memref<8x1xi32, #tpu.memory_space<vmem>>, %arg4: memref<1x1xf32, #tpu.memory_space<vmem>>, %arg5: memref<8x1xf32, #tpu.memory_space<vmem>>) attributes {dimension_semantics = [#tpu.dimension_semantics<parallel>, #tpu.dimension_semantics<arbitrary>], iteration_bounds = array<i64: 1, 1>, scalar_prefetch = 0 : i64, scratch_operands = 1 : i64, tpu.core_type = #tpu.core_type<tc>, window_params = [{transform_indices = @transform_0, window_bounds = array<i64: 8, 32>}, {transform_indices = @transform_1, window_bounds = array<i64: 8, 1>}, {transform_indices = @transform_2, window_bounds = array<i64: 1, 1>}]} {
    %c0_i32 = arith.constant 0 : i32
    %0 = arith.cmpi eq, %arg1, %c0_i32 : i32
    %1 = arith.extui %0 : i1 to i32
    %c0_i32_0 = arith.constant 0 : i32
    %2 = arith.cmpi ne, %1, %c0_i32_0 : i32
    scf.if %2 {
      %cst_11 = arith.constant 0.000000e+00 : f32
      %19 = vector.broadcast %cst_11 : f32 to vector<8x1xf32>
      %c0_12 = arith.constant 0 : index
      %c0_13 = arith.constant 0 : index
      %20 = vector.load %arg5[%c0_12, %c0_13] : memref<8x1xf32, #tpu.memory_space<vmem>>, vector<8x1xf32>
      tpu.vector_store %arg5[%c0_12, %c0_13], %19 {strides = array<i32>} : memref<8x1xf32, #tpu.memory_space<vmem>>, vector<8x1xf32>,
    } else {
    }
    %c0 = arith.constant 0 : index
    %c0_1 = arith.constant 0 : index
    %3 = vector.load %arg2[%c0, %c0_1] : memref<8x32xf32, #tpu.memory_space<vmem>>, vector<8x32xf32>
    %c0_2 = arith.constant 0 : index
    %c0_3 = arith.constant 0 : index
    %4 = vector.load %arg3[%c0_2, %c0_3] : memref<8x1xi32, #tpu.memory_space<vmem>>, vector<8x1xi32>
    %5 = tpu.iota {dimensions = array<i32: 1>} : vector<1x32xi32>
    %6 = vector.broadcast %5 : vector<1x32xi32> to vector<8x32xi32>
    %7 = vector.broadcast %4 : vector<8x1xi32> to vector<8x32xi32>
    %8 = arith.cmpi eq, %6, %7 : vector<8x32xi32>
    %cst = arith.constant 0.000000e+00 : f32
    %9 = vector.broadcast %cst : f32 to vector<8x32xf32>
    %10 = arith.select %8, %3, %9 : vector<8x32xi1>, vector<8x32xf32>
    %c0_4 = arith.constant 0 : index
    %c0_5 = arith.constant 0 : index
    %11 = vector.load %arg5[%c0_4, %c0_5] : memref<8x1xf32, #tpu.memory_space<vmem>>, vector<8x1xf32>
    %cst_6 = arith.constant dense<0.000000e+00> : vector<8xf32>
    %12 = vector.multi_reduction <add>, %10, %cst_6 [1] : vector<8x32xf32> to vector<8xf32>
    %13 = vector.shape_cast %12 : vector<8xf32> to vector<8x1xf32>
    %14 = arith.addf %11, %13 : vector<8x1xf32>
    %c0_7 = arith.constant 0 : index
    %c0_8 = arith.constant 0 : index
    %15 = vector.load %arg5[%c0_7, %c0_8] : memref<8x1xf32, #tpu.memory_space<vmem>>, vector<8x1xf32>
    tpu.vector_store %arg5[%c0_7, %c0_8], %14 {strides = array<i32>} : memref<8x1xf32, #tpu.memory_space<vmem>>, vector<8x1xf32>,
    %c0_i32_9 = arith.constant 0 : i32
    %16 = arith.cmpi eq, %arg1, %c0_i32_9 : i32
    %17 = arith.extui %16 : i1 to i32
    %c0_i32_10 = arith.constant 0 : i32
    %18 = arith.cmpi ne, %17, %c0_i32_10 : i32
    scf.if %18 {
      %c0_11 = arith.constant 0 : index
      %c0_12 = arith.constant 0 : index
      %19 = vector.load %arg5[%c0_11, %c0_12] : memref<8x1xf32, #tpu.memory_space<vmem>>, vector<8x1xf32>
      %cst_13 = arith.constant dense<0.000000e+00> : vector<1xf32>
      %20 = vector.multi_reduction <add>, %19, %cst_13 [0] : vector<8x1xf32> to vector<1xf32>
      %21 = vector.shape_cast %20 : vector<1xf32> to vector<1x1xf32>
      %cst_14 = arith.constant -1.250000e-01 : f32
      %22 = vector.broadcast %cst_14 : f32 to vector<1x1xf32>
      %23 = arith.mulf %21, %22 : vector<1x1xf32>
      %c0_15 = arith.constant 0 : index
      %c0_16 = arith.constant 0 : index
      %24 = vector.load %arg4[%c0_15, %c0_16] : memref<1x1xf32, #tpu.memory_space<vmem>>, vector<1x1xf32>
      tpu.vector_store %arg4[%c0_15, %c0_16], %23 {strides = array<i32>} : memref<1x1xf32, #tpu.memory_space<vmem>>, vector<1x1xf32>,
    } else {
    }
    return
  }
  func.func @transform_0(%arg0: i32, %arg1: i32) -> (i32, i32) {
    %c1_i32 = arith.constant 1 : i32
    %0 = arith.muli %arg0, %c1_i32 : i32
    %1 = arith.addi %0, %arg1 : i32
    %c0_i32 = arith.constant 0 : i32
    %2 = arith.minsi %1, %c0_i32 : i32
    %c0_i32_0 = arith.constant 0 : i32
    %c0_i32_1 = arith.constant 0 : i32
    return %2, %c0_i32_0 : i32, i32
  }
  func.func @transform_1(%arg0: i32, %arg1: i32) -> (i32, i32) {
    %c1_i32 = arith.constant 1 : i32
    %0 = arith.muli %arg0, %c1_i32 : i32
    %1 = arith.addi %0, %arg1 : i32
    %c0_i32 = arith.constant 0 : i32
    %2 = arith.minsi %1, %c0_i32 : i32
    %c0_i32_0 = arith.constant 0 : i32
    %c0_i32_1 = arith.constant 0 : i32
    return %2, %c0_i32_0 : i32, i32
  }
  func.func @transform_2(%arg0: i32, %arg1: i32) -> (i32, i32) {
    %c0_i32 = arith.constant 0 : i32
    %c0_i32_0 = arith.constant 0 : i32
    return %arg0, %c0_i32 : i32, i32
  }
}

</mosaic_0001>

<llo_original>
// kernel: tpu_custom_call.1
$region0: #{tpu_custom_call.1}
  #allocation0 [shape = 'u32[]', space=smem, size = 0x4, offset = 0x4, fixed_abs, tag = 'smem constant byte address 0x4 - core index']
  #allocation1 [shape = 'u32[72,128]{1,0:T(1,128)}', space=vmem, size = 0x9000, scoped, tag = 'internal scratch']
  #allocation2 [shape = 'f32[8,1]{1,0:T(8,128)}', space=vmem, size = 0x1000, scoped, tag = 'scratch operand']
  %s0 = inlined_call_operand.vmem [shape: f32[8,32], index: 0, kind: input, shape index: {}]
  %s1 = inlined_call_operand.vmem [shape: s32[8,1], index: 1, kind: input, shape index: {}]
  %s2 = inlined_call_operand.hbm [shape: f32[1,1], index: 2, kind: output, shape index: {}]
  %s3 = sld [smem:[#allocation0]]
  $region26: #{tpu_custom_call.1} parent=0
    _
  %s5 = ssub.s32 1, %s3
  %s6 = scalar_select 0, %s5, %s3
  $region1: #{tpu_custom_call.1} parent=0
    #allocation3 [shape = 'u8[512]{0}', space=vmem, size = 0x400, scoped, tag = 'output window, operand 0, single buffered']
    #allocation4 [shape = 's32[1]{0}', space=sflag, size = 0x4, scoped, tag = 'scoped memory for tpu_custom_call.1']
    %7 = vsyncpa [#allocation4], 0
    // Predicated region
    $region2: #{tpu_custom_call.1} parent=1 // pred_check
      _
    $region3: #{tpu_custom_call.1} parent=1 // pred_check_branch
      %9 = sbr.rel (0) target = $region5
    $region4: #{tpu_custom_call.1} parent=1 // pred_region
      %s10 = sadd.s32 0, 0
      %p11 = scmp.lt.s32.totalorder %s10, 0
      %s12 = scalar_select %p11, %s10, 0
      %p13 = scmp.lt.s32.totalorder %s12, 0
      %s14 = scalar_select %p13, %s12, 0
      %s15 = smul.addr %s14, 8
      %s16 = scalar_lea.vmem %s0, %s15
      %s17 = sadd.s32 0, 0
      %p18 = scmp.lt.s32.totalorder %s17, 0
      %s19 = scalar_select %p18, %s17, 0
    $region5: #{tpu_custom_call.1} parent=1 // pred_fallthru
      _
    // Predicated region
    $region6: #{tpu_custom_call.1} parent=1 // pred_check
      _
    $region7: #{tpu_custom_call.1} parent=1 // pred_check_branch
      %21 = sbr.rel (0) target = $region9
    $region8: #{tpu_custom_call.1} parent=1 // pred_region
      %s22 = sadd.s32 0, 0
      %p23 = scmp.lt.s32.totalorder %s22, 0
      %s24 = scalar_select %p23, %s22, 0
      %p25 = scmp.lt.s32.totalorder %s24, 0
      %s26 = scalar_select %p25, %s24, 0
      %s27 = smul.addr %s26, 8
      %s28 = scalar_lea.vmem %s1, %s27
      %s29 = sadd.s32 0, 0
      %p30 = scmp.lt.s32.totalorder %s29, 0
      %s31 = scalar_select %p30, %s29, 0
    $region9: #{tpu_custom_call.1} parent=1 // pred_fallthru
      _
    %s32 = sadd.s32 0, 0
    %p33 = scmp.lt.s32.totalorder %s32, 0
    %s34 = scalar_select %p33, %s32, 0
    %p35 = scmp.lt.s32.totalorder %s34, 0
    %s36 = scalar_select %p35, %s34, 0
    %s37 = smul.addr %s36, 8
    %s38 = scalar_lea.vmem %s0, %s37
    %s39 = sadd.s32 0, 0
    %p40 = scmp.lt.s32.totalorder %s39, 0
    %s41 = scalar_select %p40, %s39, 0
    %p42 = scmp.lt.s32.totalorder %s41, 0
    %s43 = scalar_select %p42, %s41, 0
    %s44 = smul.addr %s43, 8
    %s45 = scalar_lea.vmem %s1, %s44
    %s46 = sadd.s32 0, 0
    %p47 = scmp.lt.s32.totalorder %s46, 0
    %s48 = scalar_select %p47, %s46, 0
    %p49 = scmp.lt.s32.totalorder %s48, 0
    %s50 = scalar_select %p49, %s48, 0
    %s51 = smul.addr %s50, 8
    %s52 = scalar_lea.vmem %s0, %s51
    %s53 = sadd.s32 0, 0
    %p54 = scmp.lt.s32.totalorder %s53, 0
    %s55 = scalar_select %p54, %s53, 0
    %s56 = sadd.s32 0, 0
    %p57 = scmp.lt.s32.totalorder %s56, 0
    %s58 = scalar_select %p57, %s56, 0
    %p59 = scmp.lt.s32.totalorder %s58, 0
    %s60 = scalar_select %p59, %s58, 0
    %s61 = smul.addr %s60, 8
    %s62 = scalar_lea.vmem %s1, %s61
    %s63 = sadd.s32 0, 0
    %p64 = scmp.lt.s32.totalorder %s63, 0
    %s65 = scalar_select %p64, %s63, 0
    %p66 = scmp.eq.s32.totalorder 0, 0
    // Predicated region
    $region10: #{tpu_custom_call.1} parent=1 // pred_check
      %p67 = pneg %p66
    $region11: #{tpu_custom_call.1} parent=1 // pred_check_branch
      %69 = sbr.rel (%p67) target = $region13
    $region12: #{tpu_custom_call.1} parent=1 // pred_region
      %vm70 = vcmask 7168
      %71 = vst.msk [vmem:[#allocation2] sm:$0xff] %vm70, 0.0
    $region13: #{tpu_custom_call.1} parent=1 // pred_fallthru
      _
    %v72 = vld [vmem:[%s52] sm:$0xff]
    %v73 = vld [vmem:[%s62] sm:$0xff]
    %v74 = vlaneseq
    %v75 = vand.u32 %v74, 127
    %76 = vset.pattern.permute.xlu0 0
    %77 = vperm.xlu0 %76, %v73
    %v78 = vpop.permute.xlu0 %77
    %vm79 = vcmp.eq.s32.totalorder %v75, %v78
    %v80 = vsel %vm79, %v72, 0.0
    %v81 = vld [vmem:[#allocation2] sm:$0xff]
    %vm82 = vcmask 261120
    %v83 = vsel %vm82, %v80, 0.0
    %84 = vadd.xlane.f32.xlu0 %v83
    %v85 = vpop.xlane.xlu0 %84
    %v86 = vadd.f32 %v81, %v85
    %vm87 = vcmask 7168
    %88 = vst.msk [vmem:[#allocation2] sm:$0xff] %vm87, %v86
    // Predicated region
    $region14: #{tpu_custom_call.1} parent=1 // pred_check
      %p89 = pneg %p66
    $region15: #{tpu_custom_call.1} parent=1 // pred_check_branch
      %91 = sbr.rel (%p89) target = $region17
    $region16: #{tpu_custom_call.1} parent=1 // pred_region
      %v92 = vld [vmem:[#allocation2] sm:$0xff]
      %v93 = vsel %vm87, %v92, 0.0
      %v94 = vrot.slane %v93, 4
      %v95 = vadd.f32 %v93, %v94
      %v96 = vrot.slane %v95, 2
      %v97 = vadd.f32 %v95, %v96
      %v98 = vrot.slane %v97, 1
      %v99 = vadd.f32 %v97, %v98
      %v100 = vmul.f32 %v99, -0.125
      %vm101 = vcmask 0
      %102 = vst.msk [vmem:[#allocation3] sm:$0x1] %vm101, %v100
    $region17: #{tpu_custom_call.1} parent=1 // pred_fallthru
      _
    // Predicated region
    $region18: #{tpu_custom_call.1} parent=1 // pred_check
      _
    $region19: #{tpu_custom_call.1} parent=1 // pred_check_branch
      %104 = sbr.rel (0) target = $region21
    $region20: #{tpu_custom_call.1} parent=1 // pred_region
      %106 = vsyncadd [#allocation4], 0
      %s108 = sshll.u32 [#allocation3], 4
      %s109 = int_to_ptr.vmem [resolvable:$true] %s108
      %s110 = sshll.u32 %s2, 4
      %s111 = int_to_ptr.hbm [resolvable:$true] %s110
      %113 = dma.vmem_to_hbm [thread:$0]  %s109, 16, %s111, [#allocation4]
    $region21: #{tpu_custom_call.1} parent=1 // pred_fallthru
      _
    // Predicated region
    $region22: #{tpu_custom_call.1} parent=1 // pred_check
      _
    $region23: #{tpu_custom_call.1} parent=1 // pred_check_branch
      %115 = sbr.rel (0) target = $region25
    $region24: #{tpu_custom_call.1} parent=1 // pred_region
      %117 = dma.done [#allocation4], 16
    $region25: #{tpu_custom_call.1} parent=1 // pred_fallthru
      _
    %118 = vsyncpa [#allocation4], 1

</llo_original>
